<compile_context>
chip_gen: v5e
topology: v5e:2x2
jax: 0.10.0
libtpu: 0.0.40
codegen_flags: <defaults>
</compile_context>

<pallas_src>
import functools

import numpy as np
import jax
import jax.numpy as jnp
from jax import lax
from jax.experimental import pallas as pl
from jax.experimental.pallas import tpu as pltpu

LANE = 128
SUB = 16  # bf16 sublane tile height; all slab row offsets are SUB-aligned


def _round_up(x, m):
    return (x + m - 1) // m * m


def _decoder_step_kernel(idx_ref, w_ref, h0_ref, c0_ref,
                         logits_ref, h_out_ref, c_out_ref,
                         h_scr, c_scr, *,
                         B, E, EP, AP, Vp, off_g, off_hh, off_bl, off_wl):
    """One grid step: gates = onehot @ G + h @ W_hh.T -> LSTM cell -> linear."""
    t = pl.program_id(0)

    @pl.when(t == 0)
    def _init():
        h_scr[...] = h0_ref[...]
        c_scr[...] = c0_ref[...]

    # Fused embedding + ReLU + input projection + gate bias via precomputed G.
    # NOTE: out-of-range token ids silently select an all-zero G row (PyTorch
    # nn.Embedding would raise); padded vocab rows [V, Vp) are all-zero too.
    idx = idx_ref[...]                                              # (B, 1) int32
    iota = lax.broadcasted_iota(jnp.int32, (B, Vp), 1)              # (B, Vp)
    onehot = (idx == iota).astype(jnp.float32)                      # (B, Vp)

    g_tbl = w_ref[off_g:off_g + Vp, 0:4 * EP].astype(jnp.float32)   # (Vp, 4*EP)
    w_hh = w_ref[off_hh:off_hh + E, 0:4 * EP].astype(jnp.float32)   # (E, 4*EP)

    h_prev = h_scr[...]                                             # (B, EP) f32
    c_prev = c_scr[...]                                             # (B, EP) f32

    gates = (jnp.dot(onehot, g_tbl, preferred_element_type=jnp.float32)
             + jnp.dot(h_prev[:, :E], w_hh, preferred_element_type=jnp.float32))

    # PyTorch gate order i, f, g, o; each slice is a whole 128-lane span.
    i_t = jax.nn.sigmoid(gates[:, 0 * EP:1 * EP])
    f_t = jax.nn.sigmoid(gates[:, 1 * EP:2 * EP])
    g_t = jnp.tanh(gates[:, 2 * EP:3 * EP])
    o_t = jax.nn.sigmoid(gates[:, 3 * EP:4 * EP])

    # Padded lanes (>= E): gate pre-activations are exactly 0 (zero weight/bias
    # columns) and c_prev padding is exactly 0, so c/h padding stays exactly 0.
    c_new = f_t * c_prev + i_t * g_t                                # (B, EP)
    h_new = o_t * jnp.tanh(c_new)                                   # (B, EP)

    w_l = w_ref[off_wl:off_wl + E, 0:AP].astype(jnp.float32)        # (E, AP)
    b_l = w_ref[off_bl:off_bl + 1, 0:AP].astype(jnp.float32)        # (1, AP)
    logits_ref[...] = jnp.dot(h_new[:, :E], w_l,
                              preferred_element_type=jnp.float32) + b_l

    h_scr[...] = h_new
    c_scr[...] = c_new
    h_out_ref[...] = h_new
    c_out_ref[...] = c_new


def pack_decoder_params(params, action_dim, embedding_dim, slab_dtype=jnp.bfloat16):
    """One-time repack of PyTorch-layout weights into one compact lane-padded slab.

    Layout (rows x W, W = max(4*EP, AP)), all row offsets multiples of 16:
      rows [off_g , off_g +Vp) : G = relu(emb) @ W_ih.T + (b_ih + b_hh), per-gate blocked
      rows [off_hh, off_hh+E ) : W_hh.T, per-gate blocked
      row   off_bl             : b_lin   (lanes [0, A))
      rows [off_wl, off_wl+E ) : W_lin.T (lanes [0, A))
    """
    E, A, V = embedding_dim, action_dim, action_dim + 1
    EP = _round_up(E, LANE)
    AP = _round_up(A, LANE)
    Vp = _round_up(V, SUB)
    W = max(4 * EP, AP)

    off_g = 0
    off_hh = Vp
    off_bl = off_hh + _round_up(E, SUB)
    off_wl = _round_up(off_bl + 1, SUB)
    rows = _round_up(off_wl + E, SUB)

    emb = np.asarray(params["emb"], np.float32)
    w_ih = np.asarray(params["w_ih"], np.float32)
    w_hh_t = np.asarray(params["w_hh"], np.float32).T
    b_gates = np.asarray(params["b_ih"], np.float32) + np.asarray(params["b_hh"], np.float32)

    # Pre-fuse: relu(emb[x]) @ W_ih.T + b == G[x]  (row-select commutes with relu).
    G = np.maximum(emb, 0.0) @ w_ih.T + b_gates                    # (V, 4E)

    slab = np.zeros((rows, W), np.float32)
    for g in range(4):
        slab[off_g:off_g + V, g * EP:g * EP + E] = G[:, g * E:(g + 1) * E]
        slab[off_hh:off_hh + E, g * EP:g * EP + E] = w_hh_t[:, g * E:(g + 1) * E]
    slab[off_bl, 0:A] = np.asarray(params["b_lin"], np.float32)
    slab[off_wl:off_wl + E, 0:A] = np.asarray(params["w_lin"], np.float32).T

    # Padded-lane invariants the kernel relies on (a future repack must keep):
    #   (1) gate columns [g*EP+E, (g+1)*EP) of G / W_hh.T are exactly zero,
    #   (2) b_lin / W_lin.T columns beyond A are exactly zero,
    #   (3) the wrapper zero-pads h0/c0 lanes [E, EP).
    for g in range(4):
        assert not np.any(slab[:off_hh + E, g * EP + E:(g + 1) * EP])
    assert not np.any(slab[off_bl:, A:AP])

    meta = dict(E=E, A=A, V=V, EP=EP, AP=AP, Vp=Vp, W=W, rows=rows,
                off_g=off_g, off_hh=off_hh, off_bl=off_bl, off_wl=off_wl)
    return {"w_slab": jnp.asarray(slab, dtype=slab_dtype), "meta": meta}


def make_params(key, action_dim, embedding_dim):
    V = action_dim + 1
    E, A = embedding_dim, action_dim
    ks = jax.random.split(key, 8)
    scale = 0.1
    params = {
        "emb": scale * jax.random.normal(ks[0], (V, E), jnp.float32),
        "w_ih": scale * jax.random.normal(ks[1], (4 * E, E), jnp.float32),
        "w_hh": scale * jax.random.normal(ks[2], (4 * E, E), jnp.float32),
        "b_ih": scale * jax.random.normal(ks[3], (4 * E,), jnp.float32),
        "b_hh": scale * jax.random.normal(ks[4], (4 * E,), jnp.float32),
        "w_lin": scale * jax.random.normal(ks[5], (A, E), jnp.float32),
        "b_lin": scale * jax.random.normal(ks[6], (A,), jnp.float32),
    }
    params.update(pack_decoder_params(params, action_dim, embedding_dim))
    return params


def decoder_forward_seq(tokens, hidden, params):
    """Run T teacher-forced decoder steps in ONE pallas_call.

    tokens: int (T, B); hidden: (h, c) each (1, B, E).
    Returns logits (T, B, A) and the final hidden state ((1,B,E), (1,B,E)).
    """
    h0, c0 = hidden
    meta = params["meta"]
    T, B = tokens.shape
    E, A = meta["E"], meta["A"]
    EP, AP, Vp = meta["EP"], meta["AP"], meta["Vp"]

    idx = tokens.astype(jnp.int32).reshape(T, B, 1)
    h0p = jnp.pad(h0.reshape(B, E).astype(jnp.float32), ((0, 0), (0, EP - E)))
    c0p = jnp.pad(c0.reshape(B, E).astype(jnp.float32), ((0, 0), (0, EP - E)))

    w_slab = params["w_slab"]
    rows, W = w_slab.shape

    kernel = functools.partial(
        _decoder_step_kernel, B=B, E=E, EP=EP, AP=AP, Vp=Vp,
        off_g=meta["off_g"], off_hh=meta["off_hh"],
        off_bl=meta["off_bl"], off_wl=meta["off_wl"])

    flops = int(T * (2 * B * (Vp + E) * 4 * EP + 2 * B * E * AP))
    transcendentals = int(T * 5 * B * EP)                 # 3x sigmoid + 2x tanh
    bytes_accessed = int(w_slab.size * w_slab.dtype.itemsize
                         + T * B * 4                      # token ids
                         + 2 * B * EP * 4                 # h0, c0
                         + (T * B * AP + 2 * B * EP) * 4)  # outputs

    grid_spec = pltpu.PrefetchScalarGridSpec(
        num_scalar_prefetch=0,
        grid=(T,),
        in_specs=[
            pl.BlockSpec((None, B, 1), lambda t: (t, 0, 0)),   # per-step token ids
            pl.BlockSpec((rows, W), lambda t: (0, 0)),          # weight slab (VMEM-resident)
            pl.BlockSpec((B, EP), lambda t: (0, 0)),            # h0 (read at t==0)
            pl.BlockSpec((B, EP), lambda t: (0, 0)),            # c0 (read at t==0)
        ],
        out_specs=[
            pl.BlockSpec((None, B, AP), lambda t: (t, 0, 0)),   # per-step logits
            pl.BlockSpec((B, EP), lambda t: (0, 0)),            # final h
            pl.BlockSpec((B, EP), lambda t: (0, 0)),            # final c
        ],
        scratch_shapes=[pltpu.VMEM((B, EP), jnp.float32),       # h carry
                        pltpu.VMEM((B, EP), jnp.float32)],      # c carry
    )

    logits_p, h_t, c_t = pl.pallas_call(
        kernel,
        grid_spec=grid_spec,
        out_shape=(
            jax.ShapeDtypeStruct((T, B, AP), jnp.float32),
            jax.ShapeDtypeStruct((B, EP), jnp.float32),
            jax.ShapeDtypeStruct((B, EP), jnp.float32),
        ),
        compiler_params=pltpu.CompilerParams(dimension_semantics=("arbitrary",)),
        cost_estimate=pl.CostEstimate(flops=flops, transcendentals=transcendentals,
                                      bytes_accessed=bytes_accessed),
    )(idx, w_slab, h0p, c0p)

    logits = logits_p[:, :, :A]
    h1 = h_t[:, :E].reshape(1, B, E)
    c1 = c_t[:, :E].reshape(1, B, E)
    return logits, (h1, c1)


def decoder_forward(x, hidden, params):
    """Mirrors Decoder.forward: x int (B,), hidden = (h, c) each (1, B, E)."""
    return decoder_forward_seq(x.reshape(1, -1), hidden, params)


def decoder_forward_ref(x, hidden, params):
    """Pure-JAX f32 reference of the PyTorch forward, for validation."""
    h0, c0 = hidden
    E = params["emb"].shape[1]
    emb = jax.nn.relu(params["emb"][x])                                 # (B, E)
    gates = emb @ params["w_ih"].T + h0[0] @ params["w_hh"].T + params["b_ih"] + params["b_hh"]
    i_g = jax.nn.sigmoid(gates[:, 0 * E:1 * E])
    f_g = jax.nn.sigmoid(gates[:, 1 * E:2 * E])
    g_g = jnp.tanh(gates[:, 2 * E:3 * E])
    o_g = jax.nn.sigmoid(gates[:, 3 * E:4 * E])
    c1 = f_g * c0[0] + i_g * g_g
    h1 = o_g * jnp.tanh(c1)
    logits = h1 @ params["w_lin"].T + params["b_lin"]
    return logits[None], (h1[None], c1[None])


if __name__ == "__main__":
    action_dim = 8
    embedding_dim = 32
    batch = 8
    seq_len = 6

    key = jax.random.PRNGKey(0)
    k_p, k_x, k_h, k_c, k_seq = jax.random.split(key, 5)

    params = make_params(k_p, action_dim, embedding_dim)
    x = jax.random.randint(k_x, (batch,), 0, action_dim + 1, dtype=jnp.int32)
    h0 = 0.1 * jax.random.normal(k_h, (1, batch, embedding_dim), jnp.float32)
    c0 = 0.1 * jax.random.normal(k_c, (1, batch, embedding_dim), jnp.float32)

    # --- single step (exact Decoder.forward semantics) -----------------------
    logits, (h1, c1) = decoder_forward(x, (h0, c0), params)
    jax.block_until_ready((logits, h1, c1))
    logits_r, (h1_r, c1_r) = decoder_forward_ref(x, (h0, c0), params)
    # bf16 weight storage (f32 accumulate) -> small, bounded deviation from f32 ref.
    assert jnp.allclose(logits, logits_r, atol=5e-3)
    assert jnp.allclose(h1, h1_r, atol=5e-3)
    assert jnp.allclose(c1, c1_r, atol=5e-3)

    # --- multi-step teacher-forced decode: one launch, weights stay resident -
    tokens = jax.random.randint(k_seq, (seq_len, batch), 0, action_dim + 1, dtype=jnp.int32)
    logits_seq, (hT, cT) = decoder_forward_seq(tokens, (h0, c0), params)
    jax.block_until_ready((logits_seq, hT, cT))

    h_r, c_r = h0, c0
    ref_logits = []
    for t in range(seq_len):
        lg, (h_r, c_r) = decoder_forward_ref(tokens[t], (h_r, c_r), params)
        ref_logits.append(lg[0])
    ref_logits = jnp.stack(ref_logits)
    assert jnp.allclose(logits_seq, ref_logits, atol=5e-3)
    assert jnp.allclose(hT, h_r, atol=5e-3)
    assert jnp.allclose(cT, c_r, atol=5e-3)

    print("KERNEL_OK")
</pallas_src>

<mosaic_0001>
module attributes {stable_mosaic.version = 11 : i64} {
  func.func @_decoder_step_kernel(%arg0: i32, %arg1: memref<1x8x1xi32, #tpu.memory_space<vmem>>, %arg2: memref<96x512xbf16, #tpu.memory_space<vmem>>, %arg3: memref<8x128xf32, #tpu.memory_space<vmem>>, %arg4: memref<8x128xf32, #tpu.memory_space<vmem>>, %arg5: memref<1x8x128xf32, #tpu.memory_space<vmem>>, %arg6: memref<8x128xf32, #tpu.memory_space<vmem>>, %arg7: memref<8x128xf32, #tpu.memory_space<vmem>>, %arg8: memref<8x128xf32, #tpu.memory_space<vmem>>, %arg9: memref<8x128xf32, #tpu.memory_space<vmem>>) attributes {dimension_semantics = [#tpu.dimension_semantics<arbitrary>], iteration_bounds = array<i64: 1>, scalar_prefetch = 0 : i64, scratch_operands = 2 : i64, tpu.core_type = #tpu.core_type<tc>, window_params = [{transform_indices = @transform_0, window_bounds = array<i64: 1, 8, 1>}, {pipeline_mode = #tpu.pipeline_mode<synchronous>, transform_indices = @transform_1, window_bounds = array<i64: 96, 512>}, {pipeline_mode = #tpu.pipeline_mode<synchronous>, transform_indices = @transform_2, window_bounds = array<i64: 8, 128>}, {pipeline_mode = #tpu.pipeline_mode<synchronous>, transform_indices = @transform_3, window_bounds = array<i64: 8, 128>}, {transform_indices = @transform_4, window_bounds = array<i64: 1, 8, 128>}, {pipeline_mode = #tpu.pipeline_mode<synchronous>, transform_indices = @transform_5, window_bounds = array<i64: 8, 128>}, {pipeline_mode = #tpu.pipeline_mode<synchronous>, transform_indices = @transform_6, window_bounds = array<i64: 8, 128>}]} {
    %c0_i32 = arith.constant 0 : i32
    %0 = arith.cmpi eq, %arg0, %c0_i32 : i32
    %1 = arith.extui %0 : i1 to i32
    %c0_i32_0 = arith.constant 0 : i32
    %2 = arith.cmpi ne, %1, %c0_i32_0 : i32
    scf.if %2 {
      %c0_28 = arith.constant 0 : index
      %c0_29 = arith.constant 0 : index
      %60 = vector.load %arg3[%c0_28, %c0_29] : memref<8x128xf32, #tpu.memory_space<vmem>>, vector<8x128xf32>
      %c0_30 = arith.constant 0 : index
      %c0_31 = arith.constant 0 : index
      %61 = vector.load %arg8[%c0_30, %c0_31] : memref<8x128xf32, #tpu.memory_space<vmem>>, vector<8x128xf32>
      tpu.vector_store %arg8[%c0_30, %c0_31], %60 {strides = array<i32>} : memref<8x128xf32, #tpu.memory_space<vmem>>, vector<8x128xf32>,
      %c0_32 = arith.constant 0 : index
      %c0_33 = arith.constant 0 : index
      %62 = vector.load %arg4[%c0_32, %c0_33] : memref<8x128xf32, #tpu.memory_space<vmem>>, vector<8x128xf32>
      %c0_34 = arith.constant 0 : index
      %c0_35 = arith.constant 0 : index
      %63 = vector.load %arg9[%c0_34, %c0_35] : memref<8x128xf32, #tpu.memory_space<vmem>>, vector<8x128xf32>
      tpu.vector_store %arg9[%c0_34, %c0_35], %62 {strides = array<i32>} : memref<8x128xf32, #tpu.memory_space<vmem>>, vector<8x128xf32>,
    } else {
    }
    %c0 = arith.constant 0 : index
    %c0_1 = arith.constant 0 : index
    %c0_2 = arith.constant 0 : index
    %3 = vector.load %arg1[%c0, %c0_1, %c0_2] : memref<1x8x1xi32, #tpu.memory_space<vmem>>, vector<1x8x1xi32>
    %4 = vector.shape_cast %3 : vector<1x8x1xi32> to vector<8x1xi32>
    %5 = tpu.iota {dimensions = array<i32: 1>} : vector<8x16xi32>
    %6 = vector.broadcast %4 : vector<8x1xi32> to vector<8x16xi32>
    %7 = arith.cmpi eq, %6, %5 : vector<8x16xi32>
    %8 = arith.extui %7 : vector<8x16xi1> to vector<8x16xi32>
    %9 = arith.sitofp %8 : vector<8x16xi32> to vector<8x16xf32>
    %c0_3 = arith.constant 0 : index
    %c0_4 = arith.constant 0 : index
    %10 = vector.load %arg2[%c0_3, %c0_4] : memref<96x512xbf16, #tpu.memory_space<vmem>>, vector<16x512xbf16>
    %11 = arith.extf %10 : vector<16x512xbf16> to vector<16x512xf32>
    %c16 = arith.constant 16 : index
    %c0_5 = arith.constant 0 : index
    %12 = vector.load %arg2[%c16, %c0_5] : memref<96x512xbf16, #tpu.memory_space<vmem>>, vector<32x512xbf16>
    %13 = arith.extf %12 : vector<32x512xbf16> to vector<32x512xf32>
    %c0_6 = arith.constant 0 : index
    %c0_7 = arith.constant 0 : index
    %14 = vector.load %arg8[%c0_6, %c0_7] : memref<8x128xf32, #tpu.memory_space<vmem>>, vector<8x128xf32>
    %c0_8 = arith.constant 0 : index
    %c0_9 = arith.constant 0 : index
    %15 = vector.load %arg9[%c0_8, %c0_9] : memref<8x128xf32, #tpu.memory_space<vmem>>, vector<8x128xf32>
    %cst = arith.constant dense<0.000000e+00> : vector<8x512xf32>
    %16 = tpu.matmul %9, %11, %cst {dimension_numbers = #tpu.dot_dimension_numbers<[1], [0], [0], [1], [0, 0, 1, 1], [], []>} : vector<8x16xf32>, vector<16x512xf32>, vector<8x512xf32> -> vector<8x512xf32>
    %17 = vector.extract_strided_slice %14 {offsets = [0, 0], sizes = [8, 32], strides = [1, 1]} : vector<8x128xf32> to vector<8x32xf32>
    %cst_10 = arith.constant dense<0.000000e+00> : vector<8x512xf32>
    %18 = tpu.matmul %17, %13, %cst_10 {dimension_numbers = #tpu.dot_dimension_numbers<[1], [0], [0], [1], [0, 0, 1, 1], [], []>} : vector<8x32xf32>, vector<32x512xf32>, vector<8x512xf32> -> vector<8x512xf32>
    %19 = arith.addf %16, %18 : vector<8x512xf32>
    %20 = vector.extract_strided_slice %19 {offsets = [0, 0], sizes = [8, 128], strides = [1, 1]} : vector<8x512xf32> to vector<8x128xf32>
    %21 = arith.negf %20 : vector<8x128xf32>
    %22 = math.exp %21 : vector<8x128xf32>
    %cst_11 = arith.constant 1.000000e+00 : f32
    %23 = vector.broadcast %cst_11 : f32 to vector<8x128xf32>
    %24 = arith.addf %23, %22 : vector<8x128xf32>
    %25 = arith.divf %23, %24 : vector<8x128xf32>
    %26 = vector.extract_strided_slice %19 {offsets = [0, 128], sizes = [8, 128], strides = [1, 1]} : vector<8x512xf32> to vector<8x128xf32>
    %27 = arith.negf %26 : vector<8x128xf32>
    %28 = math.exp %27 : vector<8x128xf32>
    %cst_12 = arith.constant 1.000000e+00 : f32
    %29 = vector.broadcast %cst_12 : f32 to vector<8x128xf32>
    %30 = arith.addf %29, %28 : vector<8x128xf32>
    %31 = arith.divf %29, %30 : vector<8x128xf32>
    %32 = vector.extract_strided_slice %19 {offsets = [0, 256], sizes = [8, 128], strides = [1, 1]} : vector<8x512xf32> to vector<8x128xf32>
    %33 = math.tanh %32 : vector<8x128xf32>
    %34 = vector.extract_strided_slice %19 {offsets = [0, 384], sizes = [8, 128], strides = [1, 1]} : vector<8x512xf32> to vector<8x128xf32>
    %35 = arith.negf %34 : vector<8x128xf32>
    %36 = math.exp %35 : vector<8x128xf32>
    %cst_13 = arith.constant 1.000000e+00 : f32
    %37 = vector.broadcast %cst_13 : f32 to vector<8x128xf32>
    %38 = arith.addf %37, %36 : vector<8x128xf32>
    %39 = arith.divf %37, %38 : vector<8x128xf32>
    %40 = arith.mulf %31, %15 : vector<8x128xf32>
    %41 = arith.mulf %25, %33 : vector<8x128xf32>
    %42 = arith.addf %40, %41 : vector<8x128xf32>
    %43 = math.tanh %42 : vector<8x128xf32>
    %44 = arith.mulf %39, %43 : vector<8x128xf32>
    %c64 = arith.constant 64 : index
    %c0_14 = arith.constant 0 : index
    %45 = vector.load %arg2[%c64, %c0_14] : memref<96x512xbf16, #tpu.memory_space<vmem>>, vector<32x128xbf16>
    %46 = arith.extf %45 : vector<32x128xbf16> to vector<32x128xf32>
    %c48 = arith.constant 48 : index
    %c0_15 = arith.constant 0 : index
    %47 = vector.load %arg2[%c48, %c0_15] : memref<96x512xbf16, #tpu.memory_space<vmem>>, vector<1x128xbf16>
    %48 = arith.extf %47 : vector<1x128xbf16> to vector<1x128xf32>
    %49 = vector.extract_strided_slice %44 {offsets = [0, 0], sizes = [8, 32], strides = [1, 1]} : vector<8x128xf32> to vector<8x32xf32>
    %cst_16 = arith.constant dense<0.000000e+00> : vector<8x128xf32>
    %50 = tpu.matmul %49, %46, %cst_16 {dimension_numbers = #tpu.dot_dimension_numbers<[1], [0], [0], [1], [0, 0, 1, 1], [], []>} : vector<8x32xf32>, vector<32x128xf32>, vector<8x128xf32> -> vector<8x128xf32>
    %51 = vector.broadcast %48 : vector<1x128xf32> to vector<8x128xf32>
    %52 = arith.addf %50, %51 : vector<8x128xf32>
    %c0_17 = arith.constant 0 : index
    %c0_18 = arith.constant 0 : index
    %c0_19 = arith.constant 0 : index
    %53 = vector.load %arg5[%c0_17, %c0_18, %c0_19] : memref<1x8x128xf32, #tpu.memory_space<vmem>>, vector<1x8x128xf32>
    %54 = vector.shape_cast %53 : vector<1x8x128xf32> to vector<8x128xf32>
    %55 = vector.shape_cast %52 : vector<8x128xf32> to vector<1x8x128xf32>
    tpu.vector_store %arg5[%c0_17, %c0_18, %c0_19], %55 {strides = array<i32>} : memref<1x8x128xf32, #tpu.memory_space<vmem>>, vector<1x8x128xf32>,
    %c0_20 = arith.constant 0 : index
    %c0_21 = arith.constant 0 : index
    %56 = vector.load %arg8[%c0_20, %c0_21] : memref<8x128xf32, #tpu.memory_space<vmem>>, vector<8x128xf32>
    tpu.vector_store %arg8[%c0_20, %c0_21], %44 {strides = array<i32>} : memref<8x128xf32, #tpu.memory_space<vmem>>, vector<8x128xf32>,
    %c0_22 = arith.constant 0 : index
    %c0_23 = arith.constant 0 : index
    %57 = vector.load %arg9[%c0_22, %c0_23] : memref<8x128xf32, #tpu.memory_space<vmem>>, vector<8x128xf32>
    tpu.vector_store %arg9[%c0_22, %c0_23], %42 {strides = array<i32>} : memref<8x128xf32, #tpu.memory_space<vmem>>, vector<8x128xf32>,
    %c0_24 = arith.constant 0 : index
    %c0_25 = arith.constant 0 : index
    %58 = vector.load %arg6[%c0_24, %c0_25] : memref<8x128xf32, #tpu.memory_space<vmem>>, vector<8x128xf32>
    tpu.vector_store %arg6[%c0_24, %c0_25], %44 {strides = array<i32>} : memref<8x128xf32, #tpu.memory_space<vmem>>, vector<8x128xf32>,
    %c0_26 = arith.constant 0 : index
    %c0_27 = arith.constant 0 : index
    %59 = vector.load %arg7[%c0_26, %c0_27] : memref<8x128xf32, #tpu.memory_space<vmem>>, vector<8x128xf32>
    tpu.vector_store %arg7[%c0_26, %c0_27], %42 {strides = array<i32>} : memref<8x128xf32, #tpu.memory_space<vmem>>, vector<8x128xf32>,
    return
  }
  func.func @transform_0(%arg0: i32) -> (i32, i32, i32) {
    %c0_i32 = arith.constant 0 : i32
    %c0_i32_0 = arith.constant 0 : i32
    %c0_i32_1 = arith.constant 0 : i32
    return %arg0, %c0_i32, %c0_i32_0 : i32, i32, i32
  }
  func.func @transform_1(%arg0: i32) -> (i32, i32) {
    %c0_i32 = arith.constant 0 : i32
    %c0_i32_0 = arith.constant 0 : i32
    %c0_i32_1 = arith.constant 0 : i32
    return %c0_i32, %c0_i32_0 : i32, i32
  }
  func.func @transform_2(%arg0: i32) -> (i32, i32) {
    %c0_i32 = arith.constant 0 : i32
    %c0_i32_0 = arith.constant 0 : i32
    %c0_i32_1 = arith.constant 0 : i32
    return %c0_i32, %c0_i32_0 : i32, i32
  }
  func.func @transform_3(%arg0: i32) -> (i32, i32) {
    %c0_i32 = arith.constant 0 : i32
    %c0_i32_0 = arith.constant 0 : i32
    %c0_i32_1 = arith.constant 0 : i32
    return %c0_i32, %c0_i32_0 : i32, i32
  }
  func.func @transform_4(%arg0: i32) -> (i32, i32, i32) {
    %c0_i32 = arith.constant 0 : i32
    %c0_i32_0 = arith.constant 0 : i32
    %c0_i32_1 = arith.constant 0 : i32
    return %arg0, %c0_i32, %c0_i32_0 : i32, i32, i32
  }
  func.func @transform_5(%arg0: i32) -> (i32, i32) {
    %c0_i32 = arith.constant 0 : i32
    %c0_i32_0 = arith.constant 0 : i32
    %c0_i32_1 = arith.constant 0 : i32
    return %c0_i32, %c0_i32_0 : i32, i32
  }
  func.func @transform_6(%arg0: i32) -> (i32, i32) {
    %c0_i32 = arith.constant 0 : i32
    %c0_i32_0 = arith.constant 0 : i32
    %c0_i32_1 = arith.constant 0 : i32
    return %c0_i32, %c0_i32_0 : i32, i32
  }
}

</mosaic_0001>

<llo_original>
// kernel: tpu_custom_call.1
$region0: #{tpu_custom_call.1}
  #allocation0 [shape = 'u32[]', space=smem, size = 0x4, offset = 0x4, fixed_abs, tag = 'smem constant byte address 0x4 - core index']
  #allocation1 [shape = 'u32[72,128]{1,0:T(1,128)}', space=vmem, size = 0x9000, scoped, tag = 'internal scratch']
  #allocation2 [shape = 'f32[8,128]{1,0:T(8,128)}', space=vmem, size = 0x1000, scoped, tag = 'scratch operand']
  #allocation3 [shape = 'f32[8,128]{1,0:T(8,128)}', space=vmem, size = 0x1000, scoped, tag = 'scratch operand']
  %s0 = inlined_call_operand.vmem [shape: s32[1,8,1], index: 0, kind: input, shape index: {}]
  %s1 = inlined_call_operand.hbm [shape: bf16[96,512], index: 1, kind: input, shape index: {}]
  %s2 = inlined_call_operand.vmem [shape: f32[8,128], index: 2, kind: input, shape index: {}]
  %s3 = inlined_call_operand.hbm [shape: f32[8,128], index: 3, kind: input, shape index: {}]
  %s4 = inlined_call_operand.hbm [shape: f32[1,8,128], index: 4, kind: output, shape index: {0}]
  %s5 = inlined_call_operand.hbm [shape: f32[8,128], index: 5, kind: output, shape index: {1}]
  %s6 = inlined_call_operand.hbm [shape: f32[8,128], index: 6, kind: output, shape index: {2}]
  %7 = xla_tuple %s4, %s5, %s6
  %s8 = sld [smem:[#allocation0]]
  $region54: #{tpu_custom_call.1} parent=0
    _
  %s10 = ssub.s32 1, %s8
  %s11 = scalar_select 0, %s10, %s8
  $region1: #{tpu_custom_call.1} parent=0
    #allocation4 [shape = 'u8[98304]{0}', space=vmem, size = 0x18000, scoped, tag = 'input window, operand 1, single buffered']
    #allocation5 [shape = 's32[1]{0}', space=sflag, size = 0x4, scoped, tag = 'scoped memory for tpu_custom_call.1']
    #allocation6 [shape = 's32[1]{0}', space=sflag, size = 0x4, scoped, tag = 'scoped memory for tpu_custom_call.1']
    #allocation7 [shape = 'u8[4096]{0}', space=vmem, size = 0x1000, scoped, tag = 'input window, operand 3, single buffered']
    #allocation8 [shape = 's32[1]{0}', space=sflag, size = 0x4, scoped, tag = 'scoped memory for tpu_custom_call.1']
    #allocation9 [shape = 'u8[4096]{0}', space=vmem, size = 0x1000, scoped, tag = 'output window, operand 0, single buffered']
    #allocation10 [shape = 'u8[4096]{0}', space=vmem, size = 0x1000, scoped, tag = 'output window, operand 1, single buffered']
    #allocation11 [shape = 's32[1]{0}', space=sflag, size = 0x4, scoped, tag = 'scoped memory for tpu_custom_call.1']
    #allocation12 [shape = 'u8[4096]{0}', space=vmem, size = 0x1000, scoped, tag = 'output window, operand 2, single buffered']
    %12 = vsyncpa [#allocation5], 0
    %13 = vsyncpa [#allocation8], 0
    %14 = vsyncpa [#allocation6], 0
    %15 = vsyncpa [#allocation11], 0
    // Predicated region
    $region2: #{tpu_custom_call.1} parent=1 // pred_check
      _
    $region3: #{tpu_custom_call.1} parent=1 // pred_check_branch
      %17 = sbr.rel (0) target = $region5
    $region4: #{tpu_custom_call.1} parent=1 // pred_region
      _
    $region5: #{tpu_custom_call.1} parent=1 // pred_fallthru
      _
    // Predicated region
    $region6: #{tpu_custom_call.1} parent=1 // pred_check
      _
    $region7: #{tpu_custom_call.1} parent=1 // pred_check_branch
      %19 = sbr.rel (0) target = $region9
    $region8: #{tpu_custom_call.1} parent=1 // pred_region
      %21 = vsyncadd [#allocation5], 0
      %s22 = sshll.u32 %s1, 4
      %s23 = int_to_ptr.hbm [resolvable:$true] %s22
      %s24 = sshll.u32 [#allocation4], 4
      %s25 = int_to_ptr.vmem [resolvable:$true] %s24
      %30 = dma.hbm_to_vmem [thread:$0]  %s23, 3072, %s25, [#allocation5], 256, 256, 16
    $region9: #{tpu_custom_call.1} parent=1 // pred_fallthru
      _
    // Predicated region
    $region10: #{tpu_custom_call.1} parent=1 // pred_check
      _
    $region11: #{tpu_custom_call.1} parent=1 // pred_check_branch
      %32 = sbr.rel (0) target = $region13
    $region12: #{tpu_custom_call.1} parent=1 // pred_region
      _
    $region13: #{tpu_custom_call.1} parent=1 // pred_fallthru
      _
    // Predicated region
    $region14: #{tpu_custom_call.1} parent=1 // pred_check
      _
    $region15: #{tpu_custom_call.1} parent=1 // pred_check_branch
      %34 = sbr.rel (0) target = $region17
    $region16: #{tpu_custom_call.1} parent=1 // pred_region
      %36 = vsyncadd [#allocation8], 0
      %s38 = sshll.u32 %s3, 4
      %s39 = int_to_ptr.hbm [resolvable:$true] %s38
      %s40 = sshll.u32 [#allocation7], 4
      %s41 = int_to_ptr.vmem [resolvable:$true] %s40
      %43 = dma.hbm_to_vmem [thread:$0]  %s39, 128, %s41, [#allocation8]
    $region17: #{tpu_custom_call.1} parent=1 // pred_fallthru
      _
    // Predicated region
    $region18: #{tpu_custom_call.1} parent=1 // pred_check
      _
    $region19: #{tpu_custom_call.1} parent=1 // pred_check_branch
      %45 = sbr.rel (0) target = $region21
    $region20: #{tpu_custom_call.1} parent=1 // pred_region
      %47 = dma.done [#allocation5], 3072
    $region21: #{tpu_custom_call.1} parent=1 // pred_fallthru
      _
    // Predicated region
    $region22: #{tpu_custom_call.1} parent=1 // pred_check
      _
    $region23: #{tpu_custom_call.1} parent=1 // pred_check_branch
      %49 = sbr.rel (0) target = $region25
    $region24: #{tpu_custom_call.1} parent=1 // pred_region
      %51 = dma.done [#allocation8], 128
    $region25: #{tpu_custom_call.1} parent=1 // pred_fallthru
      _
    %p52 = scmp.eq.s32.totalorder 0, 0
    // Predicated region
    $region26: #{tpu_custom_call.1} parent=1 // pred_check
      %p53 = pneg %p52
    $region27: #{tpu_custom_call.1} parent=1 // pred_check_branch
      %55 = sbr.rel (%p53) target = $region29
    $region28: #{tpu_custom_call.1} parent=1 // pred_region
      %v56 = vld [vmem:[%s2] sm:$0xff]
      %57 = vst [vmem:[#allocation2] sm:$0xff] %v56
      %v58 = vld [vmem:[#allocation7] sm:$0xff]
      %59 = vst [vmem:[#allocation3] sm:$0xff] %v58
    $region29: #{tpu_custom_call.1} parent=1 // pred_fallthru
      _
    %v60 = vld [vmem:[%s0] sm:$0xff]
    %v61 = vlaneseq
    %v62 = vand.u32 %v61, 127
    %63 = vset.pattern.permute.xlu0 0
    %64 = vperm.xlu0 %63, %v60
    %v65 = vpop.permute.xlu0 %64
    %vm66 = vcmp.eq.s32.totalorder %v65, %v62
    %v67 = vsel %vm66, 1, 0
    %v68 = vcvt.s32.f32 %v67
    %v69 = vld [vmem:[#allocation4] sm:$0xff]
    %v70 = vld [vmem:[#allocation4 + $0x8] sm:$0xff]
    %v71 = vld [vmem:[#allocation4 + $0x10] sm:$0xff]
    %v72 = vld [vmem:[#allocation4 + $0x18] sm:$0xff]
    %v73 = vunpack.c.l.bf16 %v69
    %v74 = vunpack.c.h.bf16 %v69
    %v75 = vunpack.c.l.bf16 %v70
    %v76 = vunpack.c.h.bf16 %v70
    %v77 = vunpack.c.l.bf16 %v71
    %v78 = vunpack.c.h.bf16 %v71
    %v79 = vunpack.c.l.bf16 %v72
    %v80 = vunpack.c.h.bf16 %v72
    %v81 = vld [vmem:[#allocation4 + $0x20] sm:$0xff]
    %v82 = vld [vmem:[#allocation4 + $0x28] sm:$0xff]
    %v83 = vld [vmem:[#allocation4 + $0x30] sm:$0xff]
    %v84 = vld [vmem:[#allocation4 + $0x38] sm:$0xff]
    %v85 = vld [vmem:[#allocation4 + $0x40] sm:$0xff]
    %v86 = vld [vmem:[#allocation4 + $0x48] sm:$0xff]
    %v87 = vld [vmem:[#allocation4 + $0x50] sm:$0xff]
    %v88 = vld [vmem:[#allocation4 + $0x58] sm:$0xff]
    %v89 = vunpack.c.l.bf16 %v81
    %v90 = vunpack.c.h.bf16 %v81
    %v91 = vunpack.c.l.bf16 %v82
    %v92 = vunpack.c.h.bf16 %v82
    %v93 = vunpack.c.l.bf16 %v83
    %v94 = vunpack.c.h.bf16 %v83
    %v95 = vunpack.c.l.bf16 %v84
    %v96 = vunpack.c.h.bf16 %v84
    %v97 = vunpack.c.l.bf16 %v85
    %v98 = vunpack.c.h.bf16 %v85
    %v99 = vunpack.c.l.bf16 %v86
    %v100 = vunpack.c.h.bf16 %v86
    %v101 = vunpack.c.l.bf16 %v87
    %v102 = vunpack.c.h.bf16 %v87
    %v103 = vunpack.c.l.bf16 %v88
    %v104 = vunpack.c.h.bf16 %v88
    %v105 = vld [vmem:[#allocation2] sm:$0xff]
    %v106 = vld [vmem:[#allocation3] sm:$0xff]
    %vm107 = vcmask 261120
    %v109 = vsel %vm107, %v105, 0
    %111 = vmatpush.msra.mxu0 0.0
    %112 = vmatpush.msra.mxu0 0.0
    %113 = vmatpush.msra.mxu0 0.0
    %114 = vmatpush.msra.mxu0 0.0
    %115 = vmatpush.msra.mxu0 0.0
    %116 = vmatpush.msra.mxu0 0.0
    %117 = vmatpush.msra.mxu0 0.0
    %118 = vmatpush.msra.mxu0 0.0
    %119 = vmatpush.msra.mxu0 0.0
    %120 = vmatpush.msra.mxu0 0.0
    %121 = vmatpush.msra.mxu0 0.0
    %122 = vmatpush.msra.mxu0 0.0
    %123 = vmatpush.msra.mxu0 %v101
    %124 = vmatpush.msra.mxu0 %v97
    %125 = vmatpush.msra.mxu0 %v93
    %126 = vmatpush.msra.mxu0 %v89
    %127 = vmatmul.f32.gmra.mxu0 %v109
    %v128 = vpop.f32.mrf.mxu0
    %v129 = vadd.f32 0.0, %v128
    %130 = vdwg.mxu0
    %131 = vmatpush.msra.mxu0 0.0
    %132 = vmatpush.msra.mxu0 0.0
    %133 = vmatpush.msra.mxu0 0.0
    %134 = vmatpush.msra.mxu0 0.0
    %135 = vmatpush.msra.mxu0 0.0
    %136 = vmatpush.msra.mxu0 0.0
    %137 = vmatpush.msra.mxu0 0.0
    %138 = vmatpush.msra.mxu0 0.0
    %139 = vmatpush.msra.mxu0 0.0
    %140 = vmatpush.msra.mxu0 0.0
    %141 = vmatpush.msra.mxu0 0.0
    %142 = vmatpush.msra.mxu0 0.0
    %143 = vmatpush.msra.mxu0 %v102
    %144 = vmatpush.msra.mxu0 %v98
    %145 = vmatpush.msra.mxu0 %v94
    %146 = vmatpush.msra.mxu0 %v90
    %147 = vmatmul.f32.gmra.mxu0 %v109
    %v148 = vpop.f32.mrf.mxu0
    %v149 = vadd.f32 0.0, %v148
    %150 = vdwg.mxu0
    %151 = vmatpush.msra.mxu0 0.0
    %152 = vmatpush.msra.mxu0 0.0
    %153 = vmatpush.msra.mxu0 0.0
    %154 = vmatpush.msra.mxu0 0.0
    %155 = vmatpush.msra.mxu0 0.0
    %156 = vmatpush.msra.mxu0 0.0
    %157 = vmatpush.msra.mxu0 0.0
    %158 = vmatpush.msra.mxu0 0.0
    %159 = vmatpush.msra.mxu0 0.0
    %160 = vmatpush.msra.mxu0 0.0
    %161 = vmatpush.msra.mxu0 0.0
    %162 = vmatpush.msra.mxu0 0.0
    %163 = vmatpush.msra.mxu0 %v103
    %164 = vmatpush.msra.mxu0 %v99
    %165 = vmatpush.msra.mxu0 %v95
    %166 = vmatpush.msra.mxu0 %v91
    %167 = vmatmul.f32.gmra.mxu0 %v109
    %v168 = vpop.f32.mrf.mxu0
    %v169 = vadd.f32 0.0, %v168
    %170 = vdwg.mxu0
    %171 = vmatpush.msra.mxu0 0.0
    %172 = vmatpush.msra.mxu0 0.0
    %173 = vmatpush.msra.mxu0 0.0
    %174 = vmatpush.msra.mxu0 0.0
    %175 = vmatpush.msra.mxu0 0.0
    %176 = vmatpush.msra.mxu0 0.0
    %177 = vmatpush.msra.mxu0 0.0
    %178 = vmatpush.msra.mxu0 0.0
    %179 = vmatpush.msra.mxu0 0.0
    %180 = vmatpush.msra.mxu0 0.0
    %181 = vmatpush.msra.mxu0 0.0
    %182 = vmatpush.msra.mxu0 0.0
    %183 = vmatpush.msra.mxu0 %v104
    %184 = vmatpush.msra.mxu0 %v100
    %185 = vmatpush.msra.mxu0 %v96
    %186 = vmatpush.msra.mxu0 %v92
    %187 = vmatmul.f32.gmra.mxu0 %v109
    %v188 = vpop.f32.mrf.mxu0
    %v189 = vadd.f32 0.0, %v188
    %190 = vdwg.mxu0
    %vm191 = vcmask 130048
    %v193 = vsel %vm191, %v68, 0
    %195 = vmatpush.msra.mxu0 0.0
    %196 = vmatpush.msra.mxu0 0.0
    %197 = vmatpush.msra.mxu0 0.0
    %198 = vmatpush.msra.mxu0 0.0
    %199 = vmatpush.msra.mxu0 0.0
    %200 = vmatpush.msra.mxu0 0.0
    %201 = vmatpush.msra.mxu0 0.0
    %202 = vmatpush.msra.mxu0 0.0
    %203 = vmatpush.msra.mxu0 0.0
    %204 = vmatpush.msra.mxu0 0.0
    %205 = vmatpush.msra.mxu0 0.0
    %206 = vmatpush.msra.mxu0 0.0
    %207 = vmatpush.msra.mxu0 0.0
    %208 = vmatpush.msra.mxu0 0.0
    %209 = vmatpush.msra.mxu0 %v77
    %210 = vmatpush.msra.mxu0 %v73
    %211 = vmatmul.f32.gmra.mxu0 %v193
    %v212 = vpop.f32.mrf.mxu0
    %v213 = vadd.f32 %v129, %v212
    %214 = vdwg.mxu0
    %215 = vmatpush.msra.mxu0 0.0
    %216 = vmatpush.msra.mxu0 0.0
    %217 = vmatpush.msra.mxu0 0.0
    %218 = vmatpush.msra.mxu0 0.0
    %219 = vmatpush.msra.mxu0 0.0
    %220 = vmatpush.msra.mxu0 0.0
    %221 = vmatpush.msra.mxu0 0.0
    %222 = vmatpush.msra.mxu0 0.0
    %223 = vmatpush.msra.mxu0 0.0
    %224 = vmatpush.msra.mxu0 0.0
    %225 = vmatpush.msra.mxu0 0.0
    %226 = vmatpush.msra.mxu0 0.0
    %227 = vmatpush.msra.mxu0 0.0
    %228 = vmatpush.msra.mxu0 0.0
    %229 = vmatpush.msra.mxu0 %v78
    %230 = vmatpush.msra.mxu0 %v74
    %231 = vmatmul.f32.gmra.mxu0 %v193
    %v232 = vpop.f32.mrf.mxu0
    %v233 = vadd.f32 %v149, %v232
    %234 = vdwg.mxu0
    %235 = vmatpush.msra.mxu0 0.0
    %236 = vmatpush.msra.mxu0 0.0
    %237 = vmatpush.msra.mxu0 0.0
    %238 = vmatpush.msra.mxu0 0.0
    %239 = vmatpush.msra.mxu0 0.0
    %240 = vmatpush.msra.mxu0 0.0
    %241 = vmatpush.msra.mxu0 0.0
    %242 = vmatpush.msra.mxu0 0.0
    %243 = vmatpush.msra.mxu0 0.0
    %244 = vmatpush.msra.mxu0 0.0
    %245 = vmatpush.msra.mxu0 0.0
    %246 = vmatpush.msra.mxu0 0.0
    %247 = vmatpush.msra.mxu0 0.0
    %248 = vmatpush.msra.mxu0 0.0
    %249 = vmatpush.msra.mxu0 %v79
    %250 = vmatpush.msra.mxu0 %v75
    %251 = vmatmul.f32.gmra.mxu0 %v193
    %v252 = vpop.f32.mrf.mxu0
    %v253 = vadd.f32 %v169, %v252
    %254 = vdwg.mxu0
    %255 = vmatpush.msra.mxu0 0.0
    %256 = vmatpush.msra.mxu0 0.0
    %257 = vmatpush.msra.mxu0 0.0
    %258 = vmatpush.msra.mxu0 0.0
    %259 = vmatpush.msra.mxu0 0.0
    %260 = vmatpush.msra.mxu0 0.0
    %261 = vmatpush.msra.mxu0 0.0
    %262 = vmatpush.msra.mxu0 0.0
    %263 = vmatpush.msra.mxu0 0.0
    %264 = vmatpush.msra.mxu0 0.0
    %265 = vmatpush.msra.mxu0 0.0
    %266 = vmatpush.msra.mxu0 0.0
    %267 = vmatpush.msra.mxu0 0.0
    %268 = vmatpush.msra.mxu0 0.0
    %269 = vmatpush.msra.mxu0 %v80
    %270 = vmatpush.msra.mxu0 %v76
    %271 = vmatmul.f32.gmra.mxu0 %v193
    %v272 = vpop.f32.mrf.mxu0
    %v273 = vadd.f32 %v189, %v272
    %274 = vdwg.mxu0
    %v275 = vxor.u32 %v213, 2147483648
    %v276 = vmul.f32 %v275, 1.442695
    %v277 = vpow.pop %v276
    %v278 = vadd.f32 %v277, 1.0
    %v279 = vrcp.pop %v278
    %v280 = vmul.f32 %v278, %v279
    %v281 = vsub.f32 1.0, %v280
    %v282 = vmul.f32 %v279, %v281
    %v283 = vadd.f32 %v279, %v282
    %vm284 = vweird.f32 %v278
    %vm285 = vweird.f32 %v279
    %vm286 = vmor %vm284, %vm285
    %v287 = vsel %vm286, %v279, %v283
    %v288 = vand.u32 2147483647, %v278
    %vm289 = vcmp.eq.f32.partialorder %v288, 8.507059e+37
    %v290 = vand.u32 %v278, 2147483648
    %v291 = vor.u32 1.1754944e-38, %v290
    %v292 = vsel %vm289, %v291, %v287
    %v293 = vmul.f32 1.0, %v292
    %v294 = vxor.u32 %v233, 2147483648
    %v295 = vmul.f32 %v294, 1.442695
    %v296 = vpow.pop %v295
    %v297 = vadd.f32 %v296, 1.0
    %v298 = vrcp.pop %v297
    %v299 = vmul.f32 %v297, %v298
    %v300 = vsub.f32 1.0, %v299
    %v301 = vmul.f32 %v298, %v300
    %v302 = vadd.f32 %v298, %v301
    %vm303 = vweird.f32 %v297
    %vm304 = vweird.f32 %v298
    %vm305 = vmor %vm303, %vm304
    %v306 = vsel %vm305, %v298, %v302
    %v307 = vand.u32 2147483647, %v297
    %vm308 = vcmp.eq.f32.partialorder %v307, 8.507059e+37
    %v309 = vand.u32 %v297, 2147483648
    %v310 = vor.u32 1.1754944e-38, %v309
    %v311 = vsel %vm308, %v310, %v306
    %v312 = vmul.f32 1.0, %v311
    %v313 = vtanh.pop %v253
    %v314 = vxor.u32 %v273, 2147483648
    %v315 = vmul.f32 %v314, 1.442695
    %v316 = vpow.pop %v315
    %v317 = vadd.f32 %v316, 1.0
    %v318 = vrcp.pop %v317
    %v319 = vmul.f32 %v317, %v318
    %v320 = vsub.f32 1.0, %v319
    %v321 = vmul.f32 %v318, %v320
    %v322 = vadd.f32 %v318, %v321
    %vm323 = vweird.f32 %v317
    %vm324 = vweird.f32 %v318
    %vm325 = vmor %vm323, %vm324
    %v326 = vsel %vm325, %v318, %v322
    %v327 = vand.u32 2147483647, %v317
    %vm328 = vcmp.eq.f32.partialorder %v327, 8.507059e+37
    %v329 = vand.u32 %v317, 2147483648
    %v330 = vor.u32 1.1754944e-38, %v329
    %v331 = vsel %vm328, %v330, %v326
    %v332 = vmul.f32 1.0, %v331
    %v333 = vmul.f32 %v312, %v106
    %v334 = vmul.f32 %v293, %v313
    %v335 = vadd.f32 %v333, %v334
    %v336 = vtanh.pop %v335
    %v337 = vmul.f32 %v332, %v336
    %v338 = vld [vmem:[#allocation4 + $0x80] sm:$0xf]
    %v339 = vld [vmem:[#allocation4 + $0x90] sm:$0xf]
    %v340 = vld [vmem:[#allocation4 + $0xa0] sm:$0xf]
    %v341 = vld [vmem:[#allocation4 + $0xb0] sm:$0xf]
    %v342 = vunpack.c.l.bf16 %v338
    %v343 = vunpack.c.l.bf16 %v339
    %v344 = vunpack.c.l.bf16 %v340
    %v345 = vunpack.c.l.bf16 %v341
    %v346 = vld [vmem:[#allocation4 + $0x60] sm:$0x1]
    %v347 = vunpack.c.l.bf16 %v346
    %v348 = vperm.slane %v347, 0
    %v350 = vsel %vm107, %v337, 0
    %352 = vmatpush.msra.mxu0 0.0
    %353 = vmatpush.msra.mxu0 0.0
    %354 = vmatpush.msra.mxu0 0.0
    %355 = vmatpush.msra.mxu0 0.0
    %356 = vmatpush.msra.mxu0 0.0
    %357 = vmatpush.msra.mxu0 0.0
    %358 = vmatpush.msra.mxu0 0.0
    %359 = vmatpush.msra.mxu0 0.0
    %360 = vmatpush.msra.mxu0 0.0
    %361 = vmatpush.msra.mxu0 0.0
    %362 = vmatpush.msra.mxu0 0.0
    %363 = vmatpush.msra.mxu0 0.0
    %364 = vmatpush.msra.mxu0 %v345
    %365 = vmatpush.msra.mxu0 %v344
    %366 = vmatpush.msra.mxu0 %v343
    %367 = vmatpush.msra.mxu0 %v342
    %368 = vmatmul.f32.gmra.mxu0 %v350
    %v369 = vpop.f32.mrf.mxu0
    %v370 = vadd.f32 %v348, %v369
    %371 = vdwg.mxu0
    %372 = vst [vmem:[#allocation9] sm:$0xff] %v370
    %373 = vst [vmem:[#allocation2] sm:$0xff] %v337
    %374 = vst [vmem:[#allocation3] sm:$0xff] %v335
    %375 = vst [vmem:[#allocation10] sm:$0xff] %v337
    %376 = vst [vmem:[#allocation12] sm:$0xff] %v335
    // Predicated region
    $region30: #{tpu_custom_call.1} parent=1 // pred_check
      _
    $region31: #{tpu_custom_call.1} parent=1 // pred_check_branch
      %378 = sbr.rel (0) target = $region33
    $region32: #{tpu_custom_call.1} parent=1 // pred_region
      %380 = vsyncadd [#allocation6], 0
      %s382 = sshll.u32 [#allocation9], 4
      %s383 = int_to_ptr.vmem [resolvable:$true] %s382
      %s384 = sshll.u32 %s4, 4
      %s385 = int_to_ptr.hbm [resolvable:$true] %s384
      %387 = dma.vmem_to_hbm [thread:$0]  %s383, 128, %s385, [#allocation6]
    $region33: #{tpu_custom_call.1} parent=1 // pred_fallthru
      _
    // Predicated region
    $region34: #{tpu_custom_call.1} parent=1 // pred_check
      _
    $region35: #{tpu_custom_call.1} parent=1 // pred_check_branch
      %389 = sbr.rel (0) target = $region37
    $region36: #{tpu_custom_call.1} parent=1 // pred_region
      %391 = vsyncadd [#allocation11], 0
      %s393 = sshll.u32 [#allocation10], 4
      %s394 = int_to_ptr.vmem [resolvable:$true] %s393
      %s395 = sshll.u32 %s5, 4
      %s396 = int_to_ptr.hbm [resolvable:$true] %s395
      %398 = dma.vmem_to_hbm [thread:$0]  %s394, 128, %s396, [#allocation11]
    $region37: #{tpu_custom_call.1} parent=1 // pred_fallthru
      _
    // Predicated region
    $region38: #{tpu_custom_call.1} parent=1 // pred_check
      _
    $region39: #{tpu_custom_call.1} parent=1 // pred_check_branch
      %400 = sbr.rel (0) target = $region41
    $region40: #{tpu_custom_call.1} parent=1 // pred_region
      %402 = vsyncadd [#allocation11], 0
      %s404 = sshll.u32 [#allocation12], 4
      %s405 = int_to_ptr.vmem [resolvable:$true] %s404
      %s406 = sshll.u32 %s6, 4
      %s407 = int_to_ptr.hbm [resolvable:$true] %s406
      %409 = dma.vmem_to_hbm [thread:$0]  %s405, 128, %s407, [#allocation11]
    $region41: #{tpu_custom_call.1} parent=1 // pred_fallthru
      _
    // Predicated region
    $region42: #{tpu_custom_call.1} parent=1 // pred_check
      _
    $region43: #{tpu_custom_call.1} parent=1 // pred_check_branch
      %411 = sbr.rel (0) target = $region45
    $region44: #{tpu_custom_call.1} parent=1 // pred_region
      %413 = dma.done [#allocation6], 128
    $region45: #{tpu_custom_call.1} parent=1 // pred_fallthru
      _
    // Predicated region
    $region46: #{tpu_custom_call.1} parent=1 // pred_check
      _
    $region47: #{tpu_custom_call.1} parent=1 // pred_check_branch
      %415 = sbr.rel (0) target = $region49
    $region48: #{tpu_custom_call.1} parent=1 // pred_region
      %417 = dma.done [#allocation11], 128
    $region49: #{tpu_custom_call.1} parent=1 // pred_fallthru
      _
    // Predicated region
    $region50: #{tpu_custom_call.1} parent=1 // pred_check
      _
    $region51: #{tpu_custom_call.1} parent=1 // pred_check_branch
      %419 = sbr.rel (0) target = $region53
    $region52: #{tpu_custom_call.1} parent=1 // pred_region
      %421 = dma.done [#allocation11], 128
    $region53: #{tpu_custom_call.1} parent=1 // pred_fallthru
      _
    %422 = vsyncpa [#allocation5], 1
    %423 = vsyncpa [#allocation8], 1
    %424 = vsyncpa [#allocation6], 1
    %425 = vsyncpa [#allocation11], 1

</llo_original>
